<compile_context>
chip_gen: v5e
topology: v5e:2x2
jax: 0.10.0
libtpu: 0.0.40
codegen_flags: <defaults>
</compile_context>

<pallas_src>
import functools

import jax
import jax.numpy as jnp
from jax.experimental import pallas as pl
from jax.experimental.pallas import tpu as pltpu

VOCAB_SIZE = 65  # e.g. tiny-Shakespeare char vocab
LANES = 128


def _round_up(x, m):
    return ((x + m - 1) // m) * m


def _gather_logits(idx_ref, table_ref):
    """Embedding gather as a one-hot MXU matmul (exact). Returns (logits, col)."""
    tile_n = idx_ref.shape[0]
    c_pad = table_ref.shape[1]
    col = jax.lax.broadcasted_iota(jnp.int32, (tile_n, c_pad), 1)   # (TILE_N, C_PAD)
    one_hot = (col == idx_ref[...]).astype(jnp.float32)
    logits = jnp.dot(one_hot, table_ref[...],
                     preferred_element_type=jnp.float32)            # (TILE_N, C_PAD)
    return logits, col


def _tile_loss_sum(logits, col, tgt, *, c_true, n_true, tile_n):
    """Per-tile sum of row cross-entropy losses, padded rows/cols masked."""
    neg_big = jnp.float32(-1e30)
    masked = jnp.where(col < c_true, logits, neg_big)               # mask pad vocab
    m = jnp.max(masked, axis=-1, keepdims=True)                     # (TILE_N, 1)
    lse = m + jnp.log(jnp.sum(jnp.exp(masked - m), axis=-1, keepdims=True))
    tgt_oh = (col == tgt).astype(jnp.float32)
    target_logit = jnp.sum(tgt_oh * logits, axis=-1, keepdims=True)
    rowloss = lse - target_logit                                    # (TILE_N, 1)
    # Mask padded rows (beyond the true N) in-kernel.
    row = jax.lax.broadcasted_iota(jnp.int32, rowloss.shape, 0)
    global_row = pl.program_id(0) * tile_n + row
    rowloss = jnp.where(global_row < n_true, rowloss, jnp.float32(0.0))
    return jnp.sum(rowloss, axis=0, keepdims=True)                  # (1, 1)


def _train_kernel(idx_ref, tgt_ref, table_ref, logits_ref, loss_ref, *,
                  c_true, n_true):
    # idx_ref, tgt_ref : (TILE_N, 1)      int32  VMEM
    # table_ref        : (C_PAD, C_PAD)   f32    VMEM (rows/cols >= c_true are 0)
    # logits_ref       : (TILE_N, C_PAD)  f32    VMEM
    # loss_ref         : (1, LANES)       f32    VMEM (per-tile loss sum, lane-dense)
    tile_n = idx_ref.shape[0]
    logits, col = _gather_logits(idx_ref, table_ref)
    logits_ref[...] = logits
    part = _tile_loss_sum(logits, col, tgt_ref[...],
                          c_true=c_true, n_true=n_true, tile_n=tile_n)
    loss_ref[...] = jnp.broadcast_to(part, loss_ref.shape)


def _loss_only_kernel(idx_ref, tgt_ref, table_ref, loss_ref, *, c_true, n_true):
    # Same as _train_kernel but never writes logits to HBM (read-mostly kernel).
    tile_n = idx_ref.shape[0]
    logits, col = _gather_logits(idx_ref, table_ref)
    part = _tile_loss_sum(logits, col, tgt_ref[...],
                          c_true=c_true, n_true=n_true, tile_n=tile_n)
    loss_ref[...] = jnp.broadcast_to(part, loss_ref.shape)


def _infer_kernel(idx_ref, table_ref, logits_ref):
    # Inference path: embedding gather only (no targets stream, no CE work).
    logits, _ = _gather_logits(idx_ref, table_ref)
    logits_ref[...] = logits


def _vmem_limit_bytes():
    # Generation-aware VMEM cap: v7x has 64 MiB physical per TC (vs 128 MiB on
    # v5e/v6e); explicit 32 MiB also lifts v5e's 16 MiB default scoped limit.
    try:
        cap = pltpu.get_tpu_info().vmem_capacity_bytes
    except Exception:
        cap = 64 * 1024 * 1024
    return min(32 * 1024 * 1024, max(8 * 1024 * 1024, cap // 2))


def bigram_forward(idx, table, targets=None, *, tile_n=1024, loss_only=False,
                   unpad_logits=True):
    """Matches BigramLanguageModel.forward semantics.

    Returns (logits, loss):
      - targets is None                 -> logits (B, T, C), loss None
      - targets given                   -> logits (B*T, C), scalar f32 loss
      - targets given, loss_only=True   -> (None, scalar f32 loss), logits are
                                           never written to HBM
      - unpad_logits=False              -> return the padded (N_pad, C_PAD)
                                           logits directly (skips the wrapper
                                           unpad copy; layout documented here)
    """
    B, T = idx.shape
    C = table.shape[1]
    N = B * T

    C_PAD = max(LANES, _round_up(C, LANES))            # lane-dense vocab dim

    # Tile sizing: large tiles amortize the ~0.35us per-grid-step overhead,
    # clamped so (a) we never exceed the data and (b) n_tiles >= 2 so the
    # "parallel" row axis can be sharded across v7x's two TensorCores.
    tile_n = max(8, min(tile_n, _round_up(N, 8)))
    if N > 8:
        tile_n = min(tile_n, _round_up(-(-N // 2), 8))
    tile_n = _round_up(tile_n, 8)
    n_tiles = -(-N // tile_n)
    N_pad = n_tiles * tile_n

    # Pad table to (C_PAD, C_PAD); padded rows/cols are zero (masked in-kernel).
    table_p = jnp.pad(table.astype(jnp.float32),
                      ((0, C_PAD - C), (0, C_PAD - C)))

    idx_flat = jnp.pad(idx.reshape(N).astype(jnp.int32),
                       (0, N_pad - N)).reshape(N_pad, 1)

    compiler_params = pltpu.CompilerParams(
        dimension_semantics=("parallel",),
        vmem_limit_bytes=_vmem_limit_bytes(),
    )

    idx_spec = pl.BlockSpec((tile_n, 1), lambda i: (i, 0))
    table_spec = pl.BlockSpec((C_PAD, C_PAD), lambda i: (0, 0))     # resident
    logits_spec = pl.BlockSpec((tile_n, C_PAD), lambda i: (i, 0))
    loss_spec = pl.BlockSpec((1, LANES), lambda i: (0, i))          # lane-dense

    if targets is None:
        cost = pl.CostEstimate(
            flops=2 * N_pad * C_PAD * C_PAD,
            transcendentals=0,
            bytes_accessed=N_pad * 4 + C_PAD * C_PAD * 4 + N_pad * C_PAD * 4,
        )
        logits_p = pl.pallas_call(
            _infer_kernel,
            out_shape=jax.ShapeDtypeStruct((N_pad, C_PAD), jnp.float32),
            grid=(n_tiles,),
            in_specs=[idx_spec, table_spec],
            out_specs=logits_spec,
            compiler_params=compiler_params,
            cost_estimate=cost,
        )(idx_flat, table_p)
        if not unpad_logits:
            return logits_p, None                      # padded (N_pad, C_PAD)
        return logits_p[:N, :C].reshape(B, T, C), None

    tgt_flat = jnp.pad(targets.reshape(N).astype(jnp.int32),
                       (0, N_pad - N)).reshape(N_pad, 1)
    tgt_spec = pl.BlockSpec((tile_n, 1), lambda i: (i, 0))
    loss_shape = jax.ShapeDtypeStruct((1, n_tiles * LANES), jnp.float32)

    if loss_only:
        cost = pl.CostEstimate(
            flops=2 * N_pad * C_PAD * C_PAD + 6 * N_pad * C_PAD,
            transcendentals=N_pad * C_PAD + N_pad,
            bytes_accessed=2 * N_pad * 4 + C_PAD * C_PAD * 4 + n_tiles * LANES * 4,
        )
        loss_parts = pl.pallas_call(
            functools.partial(_loss_only_kernel, c_true=C, n_true=N),
            out_shape=loss_shape,
            grid=(n_tiles,),
            in_specs=[idx_spec, tgt_spec, table_spec],
            out_specs=loss_spec,
            compiler_params=compiler_params,
            cost_estimate=cost,
        )(idx_flat, tgt_flat, table_p)
        loss = jnp.sum(loss_parts.reshape(n_tiles, LANES)[:, 0]) / N
        return None, loss

    cost = pl.CostEstimate(
        flops=2 * N_pad * C_PAD * C_PAD + 6 * N_pad * C_PAD,
        transcendentals=N_pad * C_PAD + N_pad,
        bytes_accessed=(2 * N_pad * 4 + C_PAD * C_PAD * 4
                        + N_pad * C_PAD * 4 + n_tiles * LANES * 4),
    )
    logits_p, loss_parts = pl.pallas_call(
        functools.partial(_train_kernel, c_true=C, n_true=N),
        out_shape=(
            jax.ShapeDtypeStruct((N_pad, C_PAD), jnp.float32),
            loss_shape,
        ),
        grid=(n_tiles,),
        in_specs=[idx_spec, tgt_spec, table_spec],
        out_specs=(logits_spec, loss_spec),
        compiler_params=compiler_params,
        cost_estimate=cost,
    )(idx_flat, tgt_flat, table_p)

    loss = jnp.sum(loss_parts.reshape(n_tiles, LANES)[:, 0]) / N
    if not unpad_logits:
        return logits_p, loss                           # padded (N_pad, C_PAD)
    return logits_p[:N, :C], loss


if __name__ == "__main__":
    key = jax.random.PRNGKey(0)
    k_tab, k_idx, k_tgt = jax.random.split(key, 3)

    # nn.Embedding default init ~ N(0, 1)
    table = jax.random.normal(k_tab, (VOCAB_SIZE, VOCAB_SIZE), dtype=jnp.float32)

    def ref_forward(idx, targets):
        B, T = idx.shape
        logits = table[idx].reshape(B * T, VOCAB_SIZE)
        lse = jax.scipy.special.logsumexp(logits, axis=-1)
        tgt = jnp.take_along_axis(logits, targets.reshape(-1, 1), axis=-1)[:, 0]
        return logits, jnp.mean(lse - tgt)

    # --- small case: B=2, T=8 ---
    B, T = 2, 8
    idx = jax.random.randint(k_idx, (B, T), 0, VOCAB_SIZE, dtype=jnp.int32)
    targets = jax.random.randint(k_tgt, (B, T), 0, VOCAB_SIZE, dtype=jnp.int32)

    logits, loss = bigram_forward(idx, table, targets)
    jax.block_until_ready((logits, loss))
    ref_logits, ref_loss = ref_forward(idx, targets)
    assert logits.shape == (B * T, VOCAB_SIZE)
    assert jnp.allclose(logits, ref_logits, atol=1e-5)
    assert jnp.allclose(loss, ref_loss, atol=1e-4)

    # Loss-only variant: no logits HBM write at all.
    none_logits, loss_lo = bigram_forward(idx, table, targets, loss_only=True)
    jax.block_until_ready(loss_lo)
    assert none_logits is None
    assert jnp.allclose(loss_lo, ref_loss, atol=1e-4)

    # Inference path (no targets): logits (B, T, C), loss is None.
    logits_nt, loss_nt = bigram_forward(idx, table, None)
    jax.block_until_ready(logits_nt)
    assert logits_nt.shape == (B, T, VOCAB_SIZE)
    assert loss_nt is None
    assert jnp.allclose(logits_nt.reshape(B * T, VOCAB_SIZE), ref_logits, atol=1e-5)

    # Padded-logits fast path (no wrapper unpad copy).
    logits_pad, _ = bigram_forward(idx, table, None, unpad_logits=False)
    jax.block_until_ready(logits_pad)
    assert logits_pad.shape[1] == LANES
    assert jnp.allclose(logits_pad[:B * T, :VOCAB_SIZE], ref_logits, atol=1e-5)

    # --- multi-tile case with padded last tile: B=4, T=100, tile_n=128 ---
    B2, T2 = 4, 100
    k_idx2, k_tgt2 = jax.random.split(jax.random.PRNGKey(1))
    idx2 = jax.random.randint(k_idx2, (B2, T2), 0, VOCAB_SIZE, dtype=jnp.int32)
    tgt2 = jax.random.randint(k_tgt2, (B2, T2), 0, VOCAB_SIZE, dtype=jnp.int32)
    ref_logits2, ref_loss2 = ref_forward(idx2, tgt2)

    logits2, loss2 = bigram_forward(idx2, table, tgt2, tile_n=128)
    jax.block_until_ready((logits2, loss2))
    assert logits2.shape == (B2 * T2, VOCAB_SIZE)
    assert jnp.allclose(logits2, ref_logits2, atol=1e-5)
    assert jnp.allclose(loss2, ref_loss2, atol=1e-4)

    # Default (large) tile sizing on the same data, loss-only and full paths.
    logits3, loss3 = bigram_forward(idx2, table, tgt2)
    _, loss3_lo = bigram_forward(idx2, table, tgt2, loss_only=True)
    jax.block_until_ready((logits3, loss3, loss3_lo))
    assert jnp.allclose(logits3, ref_logits2, atol=1e-5)
    assert jnp.allclose(loss3, ref_loss2, atol=1e-4)
    assert jnp.allclose(loss3_lo, ref_loss2, atol=1e-4)

    print("KERNEL_OK")
</pallas_src>

<mosaic_0001>
module attributes {stable_mosaic.version = 11 : i64} {
  func.func @_train_kernel(%arg0: i32, %arg1: memref<8x1xi32, #tpu.memory_space<vmem>>, %arg2: memref<8x1xi32, #tpu.memory_space<vmem>>, %arg3: memref<128x128xf32, #tpu.memory_space<vmem>>, %arg4: memref<8x128xf32, #tpu.memory_space<vmem>>, %arg5: memref<1x128xf32, #tpu.memory_space<vmem>>) attributes {dimension_semantics = [#tpu.dimension_semantics<parallel>], iteration_bounds = array<i64: 2>, scalar_prefetch = 0 : i64, scratch_operands = 0 : i64, tpu.core_type = #tpu.core_type<tc>, window_params = [{transform_indices = @transform_0, window_bounds = array<i64: 8, 1>}, {transform_indices = @transform_1, window_bounds = array<i64: 8, 1>}, {pipeline_mode = #tpu.pipeline_mode<synchronous>, transform_indices = @transform_2, window_bounds = array<i64: 128, 128>}, {transform_indices = @transform_3, window_bounds = array<i64: 8, 128>}, {transform_indices = @transform_4, window_bounds = array<i64: 1, 128>}]} {
    %0 = tpu.iota {dimensions = array<i32: 1>} : vector<8x128xi32>
    %c0 = arith.constant 0 : index
    %c0_0 = arith.constant 0 : index
    %1 = vector.load %arg1[%c0, %c0_0] : memref<8x1xi32, #tpu.memory_space<vmem>>, vector<8x1xi32>
    %2 = vector.broadcast %1 : vector<8x1xi32> to vector<8x128xi32>
    %3 = arith.cmpi eq, %0, %2 : vector<8x128xi32>
    %4 = arith.extui %3 : vector<8x128xi1> to vector<8x128xi32>
    %5 = arith.sitofp %4 : vector<8x128xi32> to vector<8x128xf32>
    %c0_1 = arith.constant 0 : index
    %c0_2 = arith.constant 0 : index
    %6 = vector.load %arg3[%c0_1, %c0_2] : memref<128x128xf32, #tpu.memory_space<vmem>>, vector<128x128xf32>
    %cst = arith.constant dense<0.000000e+00> : vector<8x128xf32>
    %7 = tpu.matmul %5, %6, %cst {dimension_numbers = #tpu.dot_dimension_numbers<[1], [0], [0], [1], [0, 0, 1, 1], [], []>} : vector<8x128xf32>, vector<128x128xf32>, vector<8x128xf32> -> vector<8x128xf32>
    %c0_3 = arith.constant 0 : index
    %c0_4 = arith.constant 0 : index
    %8 = vector.load %arg4[%c0_3, %c0_4] : memref<8x128xf32, #tpu.memory_space<vmem>>, vector<8x128xf32>
    tpu.vector_store %arg4[%c0_3, %c0_4], %7 {strides = array<i32>} : memref<8x128xf32, #tpu.memory_space<vmem>>, vector<8x128xf32>,
    %c0_5 = arith.constant 0 : index
    %c0_6 = arith.constant 0 : index
    %9 = vector.load %arg2[%c0_5, %c0_6] : memref<8x1xi32, #tpu.memory_space<vmem>>, vector<8x1xi32>
    %c65_i32 = arith.constant 65 : i32
    %10 = vector.broadcast %c65_i32 : i32 to vector<8x128xi32>
    %11 = arith.cmpi slt, %0, %10 : vector<8x128xi32>
    %cst_7 = arith.constant -1.000000e+30 : f32
    %12 = vector.broadcast %cst_7 : f32 to vector<8x128xf32>
    %13 = arith.select %11, %7, %12 : vector<8x128xi1>, vector<8x128xf32>
    %cst_8 = arith.constant dense<0xFF800000> : vector<8xf32>
    %14 = vector.multi_reduction <maximumf>, %13, %cst_8 [1] : vector<8x128xf32> to vector<8xf32>
    %15 = vector.shape_cast %14 : vector<8xf32> to vector<8x1xf32>
    %16 = vector.broadcast %15 : vector<8x1xf32> to vector<8x128xf32>
    %17 = arith.subf %13, %16 : vector<8x128xf32>
    %18 = math.exp %17 : vector<8x128xf32>
    %cst_9 = arith.constant dense<0.000000e+00> : vector<8xf32>
    %19 = vector.multi_reduction <add>, %18, %cst_9 [1] : vector<8x128xf32> to vector<8xf32>
    %20 = vector.shape_cast %19 : vector<8xf32> to vector<8x1xf32>
    %21 = math.log %20 : vector<8x1xf32>
    %22 = arith.addf %15, %21 : vector<8x1xf32>
    %23 = vector.broadcast %9 : vector<8x1xi32> to vector<8x128xi32>
    %24 = arith.cmpi eq, %0, %23 : vector<8x128xi32>
    %25 = arith.extui %24 : vector<8x128xi1> to vector<8x128xi32>
    %26 = arith.sitofp %25 : vector<8x128xi32> to vector<8x128xf32>
    %27 = arith.mulf %26, %7 : vector<8x128xf32>
    %cst_10 = arith.constant dense<0.000000e+00> : vector<8xf32>
    %28 = vector.multi_reduction <add>, %27, %cst_10 [1] : vector<8x128xf32> to vector<8xf32>
    %29 = vector.shape_cast %28 : vector<8xf32> to vector<8x1xf32>
    %30 = arith.subf %22, %29 : vector<8x1xf32>
    %31 = tpu.iota {dimensions = array<i32: 0>} : vector<8x1xi32>
    %c8_i32 = arith.constant 8 : i32
    %32 = arith.muli %arg0, %c8_i32 : i32
    %33 = vector.broadcast %32 : i32 to vector<8x1xi32>
    %34 = arith.addi %33, %31 : vector<8x1xi32>
    %c16_i32 = arith.constant 16 : i32
    %35 = vector.broadcast %c16_i32 : i32 to vector<8x1xi32>
    %36 = arith.cmpi slt, %34, %35 : vector<8x1xi32>
    %cst_11 = arith.constant 0.000000e+00 : f32
    %37 = vector.broadcast %cst_11 : f32 to vector<8x1xf32>
    %38 = arith.select %36, %30, %37 : vector<8x1xi1>, vector<8x1xf32>
    %cst_12 = arith.constant dense<0.000000e+00> : vector<1xf32>
    %39 = vector.multi_reduction <add>, %38, %cst_12 [0] : vector<8x1xf32> to vector<1xf32>
    %40 = vector.shape_cast %39 : vector<1xf32> to vector<1x1xf32>
    %41 = vector.shape_cast %40 : vector<1x1xf32> to vector<1x1xf32>
    %42 = vector.broadcast %41 : vector<1x1xf32> to vector<1x128xf32>
    %c0_13 = arith.constant 0 : index
    %c0_14 = arith.constant 0 : index
    %43 = vector.load %arg5[%c0_13, %c0_14] : memref<1x128xf32, #tpu.memory_space<vmem>>, vector<1x128xf32>
    tpu.vector_store %arg5[%c0_13, %c0_14], %42 {strides = array<i32>} : memref<1x128xf32, #tpu.memory_space<vmem>>, vector<1x128xf32>,
    return
  }
  func.func @transform_0(%arg0: i32) -> (i32, i32) {
    %c0_i32 = arith.constant 0 : i32
    %c0_i32_0 = arith.constant 0 : i32
    return %arg0, %c0_i32 : i32, i32
  }
  func.func @transform_1(%arg0: i32) -> (i32, i32) {
    %c0_i32 = arith.constant 0 : i32
    %c0_i32_0 = arith.constant 0 : i32
    return %arg0, %c0_i32 : i32, i32
  }
  func.func @transform_2(%arg0: i32) -> (i32, i32) {
    %c0_i32 = arith.constant 0 : i32
    %c0_i32_0 = arith.constant 0 : i32
    %c0_i32_1 = arith.constant 0 : i32
    return %c0_i32, %c0_i32_0 : i32, i32
  }
  func.func @transform_3(%arg0: i32) -> (i32, i32) {
    %c0_i32 = arith.constant 0 : i32
    %c0_i32_0 = arith.constant 0 : i32
    return %arg0, %c0_i32 : i32, i32
  }
  func.func @transform_4(%arg0: i32) -> (i32, i32) {
    %c0_i32 = arith.constant 0 : i32
    %c0_i32_0 = arith.constant 0 : i32
    return %c0_i32, %arg0 : i32, i32
  }
}

</mosaic_0001>

<llo_original>
// kernel: tpu_custom_call.1
$region0: #{tpu_custom_call.1}
  #allocation0 [shape = 'u32[]', space=smem, size = 0x4, offset = 0x4, fixed_abs, tag = 'smem constant byte address 0x4 - core index']
  #allocation1 [shape = 'u32[72,128]{1,0:T(1,128)}', space=vmem, size = 0x9000, scoped, tag = 'internal scratch']
  %s0 = inlined_call_operand.vmem [shape: s32[16,1], index: 0, kind: input, shape index: {}]
  %s1 = inlined_call_operand.vmem [shape: s32[16,1], index: 1, kind: input, shape index: {}]
  %s2 = inlined_call_operand.hbm [shape: f32[128,128], index: 2, kind: input, shape index: {}]
  %s3 = inlined_call_operand.hbm [shape: f32[16,128], index: 3, kind: output, shape index: {0}]
  %s4 = inlined_call_operand.hbm [shape: f32[1,256], index: 4, kind: output, shape index: {1}]
  %5 = xla_tuple %s3, %s4
  %s6 = sld [smem:[#allocation0]]
  $region57: #{tpu_custom_call.1} parent=0
    _
  %s8 = ssub.s32 1, %s6
  %s9 = scalar_select 0, %s8, %s6
  $region1: #{tpu_custom_call.1} parent=0
    #allocation2 [shape = 'u8[65536]{0}', space=vmem, size = 0x10000, scoped, tag = 'input window, operand 2, single buffered']
    #allocation3 [shape = 's32[2]{0}', space=sflag, size = 0x8, scoped, tag = 'scoped memory for tpu_custom_call.1']
    #allocation4 [shape = 's32[2]{0}', space=sflag, size = 0x8, scoped, tag = 'scoped memory for tpu_custom_call.1']
    #allocation5 [shape = 'u8[8192]{0}', space=vmem, size = 0x2000, scoped, tag = 'output window, operand 0']
    #allocation6 [shape = 'u8[1024]{0}', space=vmem, size = 0x400, scoped, tag = 'output window, operand 1']
    #allocation7 [shape = 's32[2]{0}', space=sflag, size = 0x8, scoped, tag = 'scoped memory for tpu_custom_call.1']
    %10 = vsyncpa [#allocation3], 0
    %11 = vsyncpa [#allocation4], 0
    %s12 = scalar_lea.sflag [#allocation4], 1
    %13 = vsyncpa %s12, 0
    %14 = vsyncpa [#allocation7], 0
    %s15 = scalar_lea.sflag [#allocation7], 1
    %16 = vsyncpa %s15, 0
    loop: start=0, step=1, limit=4
    $region2: #{tpu_custom_call.1} parent=1 // loop_pre_header
      _
    $region3: #{tpu_custom_call.1} parent=1 // loop_header
      %s18 = sphi 0, %s22
      %p19 = scmp.ge.s32.totalorder %s18, 4
      %s28 = sphi 0, %s30
      %s31 = sphi 0, %s28
      %s32 = sphi 0, %s31
      %s48 = sphi 0, %s32
      %s54 = sphi 0, %s56
      %s57 = sphi 0, %s54
      %s58 = sphi 0, %s57
      %s74 = sphi 0, %s58
      %s78 = sphi 0, %s78
      %s80 = sphi 0, %s78
      %s81 = sphi 0, %s80
      %s95 = sphi 0, %s81
      %s101 = sphi 0, %s103
      %s104 = sphi 0, %s101
      %s105 = sphi 0, %s104
      %s121 = sphi 0, %s105
      %s127 = sphi 0, %s129
      %s130 = sphi 0, %s127
      %s131 = sphi 0, %s130
      %s147 = sphi 0, %s131
    $region4: #{tpu_custom_call.1} parent=1 // loop_header_branch
      %21 = sbr.rel (%p19) target = $region8
    $region5: #{tpu_custom_call.1} parent=1 // loop_body
      %s23 = ssub.s32 %s18, 1
      %s24 = ssub.s32 %s18, 2
      %s25 = sadd.s32 %s18, 1
      %s26 = ssub.s32 %s18, %s25
      %p27 = scmp.eq.s32.totalorder %s26, 0
      %s29 = sadd.s32 %s28, 1
      %s30 = scalar_select %p27, %s28, %s29
      %p33 = pneg %p27
      %p34 = scmp.eq.s32.totalorder %s18, 1
      %p35 = por %p33, %p34
      %p36 = scmp.ne.s32.totalorder %s28, %s31
      %p37 = scmp.eq.s32.totalorder %s18, 0
      %p38 = por %p36, %p37
      %p39 = scmp.ne.s32.totalorder %s28, %s31
      %p40 = scmp.eq.s32.totalorder %s23, 1
      %p41 = por %p39, %p40
      %p42 = scmp.ne.s32.totalorder %s31, %s32
      %p43 = scmp.eq.s32.totalorder %s23, 0
      %p44 = por %p42, %p43
      %p45 = scmp.ne.s32.totalorder %s31, %s32
      %p46 = scmp.eq.s32.totalorder %s24, 1
      %p47 = por %p45, %p46
      %p49 = scmp.ne.s32.totalorder %s32, %s48
      %p50 = scmp.eq.s32.totalorder %s24, 0
      %p51 = por %p49, %p50
      %s52 = ssub.s32 %s18, %s25
      %p53 = scmp.eq.s32.totalorder %s52, 0
      %s55 = sadd.s32 %s54, 1
      %s56 = scalar_select %p53, %s54, %s55
      %p59 = pneg %p53
      %p60 = scmp.eq.s32.totalorder %s18, 1
      %p61 = por %p59, %p60
      %p62 = scmp.ne.s32.totalorder %s54, %s57
      %p63 = scmp.eq.s32.totalorder %s18, 0
      %p64 = por %p62, %p63
      %p65 = scmp.ne.s32.totalorder %s54, %s57
      %p66 = scmp.eq.s32.totalorder %s23, 1
      %p67 = por %p65, %p66
      %p68 = scmp.ne.s32.totalorder %s57, %s58
      %p69 = scmp.eq.s32.totalorder %s23, 0
      %p70 = por %p68, %p69
      %p71 = scmp.ne.s32.totalorder %s57, %s58
      %p72 = scmp.eq.s32.totalorder %s24, 1
      %p73 = por %p71, %p72
      %p75 = scmp.ne.s32.totalorder %s58, %s74
      %p76 = scmp.eq.s32.totalorder %s24, 0
      %p77 = por %p75, %p76
      %s79 = sadd.s32 %s78, 1
      %p82 = scmp.eq.s32.totalorder %s18, 1
      %p83 = scmp.ne.s32.totalorder %s78, %s80
      %p84 = scmp.eq.s32.totalorder %s18, 0
      %p85 = por %p83, %p84
      %p86 = scmp.ne.s32.totalorder %s78, %s80
      %p87 = scmp.eq.s32.totalorder %s23, 1
      %p88 = por %p86, %p87
      %p89 = scmp.ne.s32.totalorder %s80, %s81
      %p90 = scmp.eq.s32.totalorder %s23, 0
      %p91 = por %p89, %p90
      %p92 = scmp.ne.s32.totalorder %s80, %s81
      %p93 = scmp.eq.s32.totalorder %s24, 1
      %p94 = por %p92, %p93
      %p96 = scmp.ne.s32.totalorder %s81, %s95
      %p97 = scmp.eq.s32.totalorder %s24, 0
      %p98 = por %p96, %p97
      %s99 = ssub.s32 %s18, %s25
      %p100 = scmp.eq.s32.totalorder %s99, 0
      %s102 = sadd.s32 %s101, 1
      %s103 = scalar_select %p100, %s101, %s102
      %p106 = pneg %p100
      %p107 = scmp.eq.s32.totalorder %s18, 1
      %p108 = por %p106, %p107
      %p109 = scmp.ne.s32.totalorder %s101, %s104
      %p110 = scmp.eq.s32.totalorder %s18, 0
      %p111 = por %p109, %p110
      %p112 = scmp.ne.s32.totalorder %s101, %s104
      %p113 = scmp.eq.s32.totalorder %s23, 1
      %p114 = por %p112, %p113
      %p115 = scmp.ne.s32.totalorder %s104, %s105
      %p116 = scmp.eq.s32.totalorder %s23, 0
      %p117 = por %p115, %p116
      %p118 = scmp.ne.s32.totalorder %s104, %s105
      %p119 = scmp.eq.s32.totalorder %s24, 1
      %p120 = por %p118, %p119
      %p122 = scmp.ne.s32.totalorder %s105, %s121
      %p123 = scmp.eq.s32.totalorder %s24, 0
      %p124 = por %p122, %p123
      %s125 = ssub.s32 %s18, %s25
      %p126 = scmp.eq.s32.totalorder %s125, 0
      %s128 = sadd.s32 %s127, 1
      %s129 = scalar_select %p126, %s127, %s128
      %p132 = pneg %p126
      %p133 = scmp.eq.s32.totalorder %s18, 1
      %p134 = por %p132, %p133
      %p135 = scmp.ne.s32.totalorder %s127, %s130
      %p136 = scmp.eq.s32.totalorder %s18, 0
      %p137 = por %p135, %p136
      %p138 = scmp.ne.s32.totalorder %s127, %s130
      %p139 = scmp.eq.s32.totalorder %s23, 1
      %p140 = por %p138, %p139
      %p141 = scmp.ne.s32.totalorder %s130, %s131
      %p142 = scmp.eq.s32.totalorder %s23, 0
      %p143 = por %p141, %p142
      %p144 = scmp.ne.s32.totalorder %s130, %s131
      %p145 = scmp.eq.s32.totalorder %s24, 1
      %p146 = por %p144, %p145
      %p148 = scmp.ne.s32.totalorder %s131, %s147
      %p149 = scmp.eq.s32.totalorder %s24, 0
      %p150 = por %p148, %p149
      %p151 = scmp.le.s32.totalorder 1, %s18
      %p152 = scmp.lt.s32.totalorder %s18, 3
      %p153 = pnand %p151, %p152
      %p154 = pneg %p153
      // Predicated region
      $region9: #{tpu_custom_call.1} parent=5 // pred_check
        _
      $region10: #{tpu_custom_call.1} parent=5 // pred_check_branch
        %156 = sbr.rel (%p153) target = $region12
      $region11: #{tpu_custom_call.1} parent=5 // pred_region
        %s157 = ssub.s32 %s18, 1
        // Predicated region
        $region13: #{tpu_custom_call.1} parent=11 // pred_check
          %p158 = pneg %p91
        $region14: #{tpu_custom_call.1} parent=11 // pred_check_branch
          %160 = sbr.rel (%p158) target = $region16
        $region15: #{tpu_custom_call.1} parent=11 // pred_region
          %162 = vsyncadd [#allocation3], 0
          %s163 = sshll.u32 %s2, 4
          %s164 = int_to_ptr.hbm [resolvable:$true] %s163
          %s165 = sshll.u32 [#allocation2], 4
          %s166 = int_to_ptr.vmem [resolvable:$true] %s165
          %171 = dma.hbm_to_vmem [thread:$0]  %s164, 2048, %s166, [#allocation3], 128, 128, 8
        $region16: #{tpu_custom_call.1} parent=11 // pred_fallthru
          _
      $region12: #{tpu_custom_call.1} parent=5 // pred_fallthru
        _
      %p172 = scmp.lt.s32.totalorder %s18, 2
      // Predicated region
      $region17: #{tpu_custom_call.1} parent=5 // pred_check
        %p173 = pneg %p172
      $region18: #{tpu_custom_call.1} parent=5 // pred_check_branch
        %175 = sbr.rel (%p173) target = $region20
      $region19: #{tpu_custom_call.1} parent=5 // pred_region
        // Predicated region
        $region21: #{tpu_custom_call.1} parent=19 // pred_check
          %p176 = pneg %p38
        $region22: #{tpu_custom_call.1} parent=19 // pred_check_branch
          %178 = sbr.rel (%p176) target = $region24
        $region23: #{tpu_custom_call.1} parent=19 // pred_region
          %p179 = scmp.lt.s32.totalorder %s18, 1
          %s180 = scalar_select %p179, %s18, 1
          %s181 = smul.addr %s180, 8
          %s182 = scalar_lea.vmem %s0, %s181
        $region24: #{tpu_custom_call.1} parent=19 // pred_fallthru
          _
        // Predicated region
        $region25: #{tpu_custom_call.1} parent=19 // pred_check
          %p183 = pneg %p64
        $region26: #{tpu_custom_call.1} parent=19 // pred_check_branch
          %185 = sbr.rel (%p183) target = $region28
        $region27: #{tpu_custom_call.1} parent=19 // pred_region
          %p186 = scmp.lt.s32.totalorder %s18, 1
          %s187 = scalar_select %p186, %s18, 1
          %s188 = smul.addr %s187, 8
          %s189 = scalar_lea.vmem %s1, %s188
        $region28: #{tpu_custom_call.1} parent=19 // pred_fallthru
          _
      $region20: #{tpu_custom_call.1} parent=5 // pred_fallthru
        _
      %p190 = scmp.le.s32.totalorder 1, %s18
      %p191 = scmp.lt.s32.totalorder %s18, 3
      %p192 = pnand %p190, %p191
      %p193 = pneg %p192
      // Predicated region
      $region29: #{tpu_custom_call.1} parent=5 // pred_check
        _
      $region30: #{tpu_custom_call.1} parent=5 // pred_check_branch
        %195 = sbr.rel (%p192) target = $region32
      $region31: #{tpu_custom_call.1} parent=5 // pred_region
        %s196 = ssub.s32 %s18, 1
        // Predicated region
        $region33: #{tpu_custom_call.1} parent=31 // pred_check
          %p197 = pneg %p91
        $region34: #{tpu_custom_call.1} parent=31 // pred_check_branch
          %199 = sbr.rel (%p197) target = $region36
        $region35: #{tpu_custom_call.1} parent=31 // pred_region
          %201 = dma.done [#allocation3], 2048
        $region36: #{tpu_custom_call.1} parent=31 // pred_fallthru
          _
        %p202 = scmp.lt.s32.totalorder %s23, 1
        %s203 = scalar_select %p202, %s23, 1
        %s204 = smul.addr %s203, 8
        %s205 = scalar_lea.vmem %s0, %s204
        %p206 = pneg %p44
        %p207 = pneg %p41
        %p208 = scmp.lt.s32.totalorder %s23, 1
        %s209 = scalar_select %p208, %s23, 1
        %s210 = smul.addr %s209, 8
        %s211 = scalar_lea.vmem %s1, %s210
        %p212 = pneg %p70
        %p213 = pneg %p67
        %p214 = pneg %p91
        %p215 = pneg %p88
        %p216 = pneg %p117
        %p217 = pneg %p114
        %s218 = sand.u32 %s104, 1
        %s219 = scalar_lea.sflag [#allocation4], %s218
        %s220 = sand.u32 %s104, 1
        %s221 = smul.addr %s220, 8
        %s222 = scalar_lea.vmem [#allocation5], %s221
        %p223 = pneg %p143
        %p224 = pneg %p140
        %s225 = sand.u32 %s130, 1
        %s226 = scalar_lea.sflag [#allocation7], %s225
        %s227 = sand.u32 %s130, 1
        %s228 = scalar_lea.vmem [#allocation6], %s227
        %p229 = scmp.lt.s32.totalorder %s23, 1
        %s230 = scalar_select %p229, %s23, 1
        %s231 = smul.addr %s230, 8
        %s232 = scalar_lea.vmem %s0, %s231
        %p233 = scmp.lt.s32.totalorder %s23, 1
        %s234 = scalar_select %p233, %s23, 1
        %s235 = smul.addr %s234, 8
        %s236 = scalar_lea.vmem %s1, %s235
        %v237 = vlaneseq
        %v238 = vand.u32 %v237, 127
        %v239 = vld [vmem:[%s232] sm:$0xff]
        %240 = vset.pattern.permute.xlu0 0
        %241 = vperm.xlu0 %240, %v239
        %v242 = vpop.permute.xlu0 %241
        %vm243 = vcmp.eq.s32.totalorder %v238, %v242
        %v244 = vsel %vm243, 1, 0
        %v245 = vcvt.s32.f32 %v244
        %v246 = vld [vmem:[#allocation2] sm:$0xff]
        %v247 = vld [vmem:[#allocation2 + $0x8] sm:$0xff]
        %v248 = vld [vmem:[#allocation2 + $0x10] sm:$0xff]
        %v249 = vld [vmem:[#allocation2 + $0x18] sm:$0xff]
        %v250 = vld [vmem:[#allocation2 + $0x20] sm:$0xff]
        %v251 = vld [vmem:[#allocation2 + $0x28] sm:$0xff]
        %v252 = vld [vmem:[#allocation2 + $0x30] sm:$0xff]
        %v253 = vld [vmem:[#allocation2 + $0x38] sm:$0xff]
        %v254 = vld [vmem:[#allocation2 + $0x40] sm:$0xff]
        %v255 = vld [vmem:[#allocation2 + $0x48] sm:$0xff]
        %v256 = vld [vmem:[#allocation2 + $0x50] sm:$0xff]
        %v257 = vld [vmem:[#allocation2 + $0x58] sm:$0xff]
        %v258 = vld [vmem:[#allocation2 + $0x60] sm:$0xff]
        %v259 = vld [vmem:[#allocation2 + $0x68] sm:$0xff]
        %v260 = vld [vmem:[#allocation2 + $0x70] sm:$0xff]
        %v261 = vld [vmem:[#allocation2 + $0x78] sm:$0xff]
        %262 = vmatpush.msra.mxu0 %v261
        %263 = vmatpush.msra.mxu0 %v260
        %264 = vmatpush.msra.mxu0 %v259
        %265 = vmatpush.msra.mxu0 %v258
        %266 = vmatpush.msra.mxu0 %v257
        %267 = vmatpush.msra.mxu0 %v256
        %268 = vmatpush.msra.mxu0 %v255
        %269 = vmatpush.msra.mxu0 %v254
        %270 = vmatpush.msra.mxu0 %v253
        %271 = vmatpush.msra.mxu0 %v252
        %272 = vmatpush.msra.mxu0 %v251
        %273 = vmatpush.msra.mxu0 %v250
        %274 = vmatpush.msra.mxu0 %v249
        %275 = vmatpush.msra.mxu0 %v248
        %276 = vmatpush.msra.mxu0 %v247
        %277 = vmatpush.msra.mxu0 %v246
        %278 = vmatmul.f32.gmra.mxu0 %v245
        %v279 = vpop.f32.mrf.mxu0
        %v280 = vadd.f32 0.0, %v279
        %281 = vdwg.mxu0
        %282 = vst [vmem:[%s222] sm:$0xff] %v280
        %v283 = vld [vmem:[%s236] sm:$0xff]
        %vm284 = vcmp.lt.s32.totalorder %v238, 65
        %v285 = vsel %vm284, %v280, -1e+30
        %286 = vmax.xlane.f32.xlu0 %v285
        %v287 = vpop.xlane.xlu0 %286
        %v288 = vsub.f32 %v285, %v287
        %v289 = vmul.f32 %v288, 1.442695
        %v290 = vpow.pop %v289
        %291 = vadd.xlane.f32.xlu0 %v290
        %v292 = vpop.xlane.xlu0 %291
        %v293 = vlog2.pop %v292
        %v294 = vmul.f32 %v293, 0.6931472
        %v295 = vadd.f32 %v287, %v294
        %296 = vset.pattern.permute.xlu0 0
        %297 = vperm.xlu0 %296, %v283
        %v298 = vpop.permute.xlu0 %297
        %vm299 = vcmp.eq.s32.totalorder %v238, %v298
        %v300 = vsel %vm299, 1, 0
        %v301 = vcvt.s32.f32 %v300
        %v302 = vmul.f32 %v301, %v280
        %303 = vadd.xlane.f32.xlu0 %v302
        %v304 = vpop.xlane.xlu0 %303
        %v305 = vsub.f32 %v295, %v304
        %v306 = vlaneseq
        %v307 = vshrl.u32 %v306, 7
        %s308 = smul.u32 %s23, 8
        %v309 = vstv %s308
        %v310 = vadd.s32 %v309, %v307
        %vm311 = vcmp.lt.s32.totalorder %v310, 16
        %v312 = vsel %vm311, %v305, 0.0
        %v313 = vrot.slane %v312, 4
        %v314 = vadd.f32 %v312, %v313
        %v315 = vrot.slane %v314, 2
        %v316 = vadd.f32 %v314, %v315
        %v317 = vrot.slane %v316, 1
        %v318 = vadd.f32 %v316, %v317
        %319 = vst [vmem:[%s228] sm:$0x1] %v318
        %s320 = sand.u32 %s104, 1
        %s321 = scalar_lea.sflag [#allocation4], %s320
        %s322 = sand.u32 %s104, 1
        %s323 = smul.addr %s322, 8
        %s324 = scalar_lea.vmem [#allocation5], %s323
        %s325 = sand.u32 %s130, 1
        %s326 = scalar_lea.sflag [#allocation7], %s325
        %s327 = sand.u32 %s130, 1
        %s328 = scalar_lea.vmem [#allocation6], %s327
        // Predicated region
        $region37: #{tpu_custom_call.1} parent=31 // pred_check
          %p329 = pneg %p114
        $region38: #{tpu_custom_call.1} parent=31 // pred_check_branch
          %331 = sbr.rel (%p329) target = $region40
        $region39: #{tpu_custom_call.1} parent=31 // pred_region
          %333 = vsyncadd %s321, 0
          %s334 = smul.addr %s23, 8
          %s335 = scalar_lea.hbm %s3, %s334
          %s337 = sshll.u32 %s324, 4
          %s338 = int_to_ptr.vmem [resolvable:$true] %s337
          %s339 = sshll.u32 %s335, 4
          %s340 = int_to_ptr.hbm [resolvable:$true] %s339
          %342 = dma.vmem_to_hbm [thread:$0]  %s338, 128, %s340, %s321
        $region40: #{tpu_custom_call.1} parent=31 // pred_fallthru
          _
        // Predicated region
        $region41: #{tpu_custom_call.1} parent=31 // pred_check
          %p343 = pneg %p140
        $region42: #{tpu_custom_call.1} parent=31 // pred_check_branch
          %345 = sbr.rel (%p343) target = $region44
        $region43: #{tpu_custom_call.1} parent=31 // pred_region
          %347 = vsyncadd %s326, 0
          %s348 = scalar_lea.hbm %s4, %s23
          %s350 = sshll.u32 %s328, 4
          %s351 = int_to_ptr.vmem [resolvable:$true] %s350
          %s352 = sshll.u32 %s348, 4
          %s353 = int_to_ptr.hbm [resolvable:$true] %s352
          %355 = dma.vmem_to_hbm [thread:$0]  %s351, 16, %s353, %s326
        $region44: #{tpu_custom_call.1} parent=31 // pred_fallthru
          _
      $region32: #{tpu_custom_call.1} parent=5 // pred_fallthru
        _
      %p356 = scmp.le.s32.totalorder 2, %s18
      // Predicated region
      $region45: #{tpu_custom_call.1} parent=5 // pred_check
        %p357 = pneg %p356
      $region46: #{tpu_custom_call.1} parent=5 // pred_check_branch
        %359 = sbr.rel (%p357) target = $region48
      $region47: #{tpu_custom_call.1} parent=5 // pred_region
        %s360 = ssub.s32 %s18, 2
        // Predicated region
        $region49: #{tpu_custom_call.1} parent=47 // pred_check
          %p361 = pneg %p120
        $region50: #{tpu_custom_call.1} parent=47 // pred_check_branch
          %363 = sbr.rel (%p361) target = $region52
        $region51: #{tpu_custom_call.1} parent=47 // pred_region
          %s364 = sand.u32 %s105, 1
          %s365 = scalar_lea.sflag [#allocation4], %s364
          %s366 = sand.u32 %s105, 1
          %s367 = smul.addr %s366, 8
          %s368 = scalar_lea.vmem [#allocation5], %s367
          %370 = dma.done %s365, 128
        $region52: #{tpu_custom_call.1} parent=47 // pred_fallthru
          _
        // Predicated region
        $region53: #{tpu_custom_call.1} parent=47 // pred_check
          %p371 = pneg %p146
        $region54: #{tpu_custom_call.1} parent=47 // pred_check_branch
          %373 = sbr.rel (%p371) target = $region56
        $region55: #{tpu_custom_call.1} parent=47 // pred_region
          %s374 = sand.u32 %s131, 1
          %s375 = scalar_lea.sflag [#allocation7], %s374
          %s376 = sand.u32 %s131, 1
          %s377 = scalar_lea.vmem [#allocation6], %s376
          %379 = dma.done %s375, 16
        $region56: #{tpu_custom_call.1} parent=47 // pred_fallthru
          _
      $region48: #{tpu_custom_call.1} parent=5 // pred_fallthru
        _
    $region6: #{tpu_custom_call.1} parent=1 // loop_footer
      %s22 = sadd.s32 1, %s18
    $region7: #{tpu_custom_call.1} parent=1 // loop_footer_branch
      %17 = sbr.rel target = $region3
    $region8: #{tpu_custom_call.1} parent=1 // loop_exit
      _
    %380 = vsyncpa [#allocation3], 1
    %s381 = scalar_lea.sflag [#allocation3], 1
    %382 = vsyncpa %s381, 1
    %383 = vsyncpa [#allocation4], 1
    %s384 = scalar_lea.sflag [#allocation4], 1
    %385 = vsyncpa %s384, 1
    %386 = vsyncpa [#allocation7], 1
    %s387 = scalar_lea.sflag [#allocation7], 1
    %388 = vsyncpa %s387, 1

</llo_original>
